<compile_context>
chip_gen: v7x
topology: tpu7x:2x2x1
jax: 0.10.0
libtpu: 0.0.40
codegen_flags: <defaults>
</compile_context>

<pallas_src>
import functools

import jax
import jax.numpy as jnp
from jax import lax
from jax.experimental import pallas as pl
from jax.experimental.pallas import tpu as pltpu

BN_EPS = 1e-5
NEG_LOGIT = -1e30     # bias for padded head columns -> exp() underflows to 0
LANE = 128

_VMEM_SPEC = pl.BlockSpec(memory_space=pltpu.MemorySpace.VMEM)


def _round_up(n, m):
    return -(-n // m) * m


# ----------------------------- fused kernel ---------------------------------

def make_fused_kernel(num_blocks):
    """num_blocks LinearBlocks (Linear->ReLU->BN) + (Linear->softmax) head."""

    def kernel(x_ref, w0_ref, wstack_ref, vec_ref, o_ref):
        # int8 one-hot -> bf16 MXU operand (two-step cast: i8 -> f32 -> bf16).
        x = x_ref[...].astype(jnp.float32).astype(jnp.bfloat16)   # (B, K0_pad)
        w = w0_ref[...]                                            # (K0_pad, E)

        for l in range(num_blocks):                                # unrolled
            vl = vec_ref[l]                          # (8, E): bias, gamma, beta, 0...
            # Linear (bf16 operands, f32 accumulation on the MXU) + bias + ReLU
            y = jnp.dot(x, w, preferred_element_type=jnp.float32)
            y = jnp.maximum(y + vl[0:1, :], 0.0)
            # BatchNorm1d, training mode: biased batch statistics over axis 0.
            mean = jnp.mean(y, axis=0, keepdims=True)
            var = jnp.mean(jnp.square(y - mean), axis=0, keepdims=True)
            scale = vl[1:2, :] * lax.rsqrt(var + BN_EPS)           # gamma folded
            shift = vl[2:3, :] - mean * scale
            x = (y * scale + shift).astype(jnp.bfloat16)           # bf16 for next dot
            w = wstack_ref[l]                        # next layer's weights (E, E)

        # Head: Linear (output padded to E lanes; pad cols get -1e30 bias) + softmax.
        logits = jnp.dot(x, w, preferred_element_type=jnp.float32)
        logits = logits + vec_ref[num_blocks][0:1, :]
        m = jnp.max(logits, axis=-1, keepdims=True)
        e = jnp.exp(logits - m)
        denom = jnp.sum(e, axis=-1, keepdims=True)
        o_ref[...] = (e * pl.reciprocal(denom, approx=True)).astype(o_ref.dtype)

    return kernel


# ----------------------------- parameters -----------------------------------

def init_params(key, embed_dim, num_hidden_layers, input_dim, output_dim):
    """f32 parameters in PyTorch layout: Linear weight (out, in)."""
    dims = [input_dim] + [embed_dim] * num_hidden_layers
    blocks = []
    for i in range(num_hidden_layers):
        d_in, d_out = dims[i], dims[i + 1]
        key, kw = jax.random.split(key)
        w = jax.random.normal(kw, (d_out, d_in), jnp.float32) * (1.0 / jnp.sqrt(d_in))
        b = jnp.zeros((1, d_out), jnp.float32)
        gamma = jnp.ones((1, d_out), jnp.float32)
        beta = jnp.zeros((1, d_out), jnp.float32)
        blocks.append((w, b, gamma, beta))
    key, kw = jax.random.split(key)
    wh = jax.random.normal(kw, (output_dim, embed_dim), jnp.float32) * (
        1.0 / jnp.sqrt(embed_dim))
    bh = jnp.zeros((1, output_dim), jnp.float32)
    return {"blocks": blocks, "head": (wh, bh)}


def pack_kernel_params(params):
    """Pack into 3 arrays: W0 (K0_pad,E) bf16, weight stack (L,E,E) bf16,
    vector params (L+1, 8, E) f32 (rows: bias, gamma, beta; head row 0 = bias)."""
    blocks = params["blocks"]
    L = len(blocks)
    wh, bh = params["head"]
    E = blocks[0][0].shape[0]                         # embed_dim
    out_dim = wh.shape[0]
    assert E % LANE == 0, "embed_dim must be a multiple of 128"
    assert out_dim <= E, "head output must fit in embed_dim lanes for weight stacking"

    # Layer 0 weight: transpose to (in, out), pad contraction dim to 128-multiple.
    w0 = blocks[0][0].T                               # (input_dim, E)
    k0 = w0.shape[0]
    w0 = jnp.pad(w0, ((0, _round_up(k0, LANE) - k0), (0, 0))).astype(jnp.bfloat16)

    # Hidden weights 1..L-1 and head weight (padded to E output lanes), stacked.
    ws = [blk[0].T for blk in blocks[1:]]             # each (E, E)
    wh_t = jnp.pad(wh.T, ((0, 0), (0, E - out_dim)))  # (E, E), zero pad cols
    w_stack = jnp.stack(ws + [wh_t]).astype(jnp.bfloat16)        # (L, E, E)

    # Vector params: one (8, E) slab per layer + one for the head.
    entries = []
    for (_, b, g, be) in blocks:
        entry = jnp.zeros((8, E), jnp.float32)
        entry = entry.at[0].set(b[0]).at[1].set(g[0]).at[2].set(be[0])
        entries.append(entry)
    bh_pad = jnp.pad(bh[0], (0, E - out_dim), constant_values=NEG_LOGIT)
    head_entry = jnp.zeros((8, E), jnp.float32).at[0].set(bh_pad)
    entries.append(head_entry)
    vec = jnp.stack(entries)                                      # (L+1, 8, E)

    return {"w0": w0, "w_stack": w_stack, "vec": vec}


# ----------------------------- forward --------------------------------------

def fused_forward(inputs, kparams, *, output_dim):
    """inputs: int32 (B, 54) cube state with values in [0, 6). Returns (B, output_dim) bf16."""
    w0, w_stack, vec = kparams["w0"], kparams["w_stack"], kparams["vec"]
    num_blocks = w_stack.shape[0]                     # (L-1 hidden) + head == L
    B = inputs.shape[0]
    k0_pad, E = w0.shape

    # int8 one-hot (half the input bytes of bf16), padded to lane-aligned K.
    x = jax.nn.one_hot(inputs, 6, dtype=jnp.int8).reshape(B, -1)
    x = jnp.pad(x, ((0, 0), (0, k0_pad - x.shape[1])))

    out = pl.pallas_call(
        make_fused_kernel(num_blocks),
        out_shape=jax.ShapeDtypeStruct((B, E), jnp.bfloat16),
        in_specs=[_VMEM_SPEC] * 4,
        out_specs=_VMEM_SPEC,
        compiler_params=pltpu.CompilerParams(vmem_limit_bytes=32 * 1024 * 1024),
    )(x, w0, w_stack, vec)
    return out[:, :output_dim]


def reference_forward(inputs, params):
    """Pure-JAX f32 reference (PyTorch semantics) for correctness checking."""
    B = inputs.shape[0]
    x = jax.nn.one_hot(inputs, 6, dtype=jnp.float32).reshape(B, -1)
    for (w, b, g, be) in params["blocks"]:
        y = jnp.maximum(x @ w.T + b, 0.0)
        mean = jnp.mean(y, axis=0, keepdims=True)
        var = jnp.mean(jnp.square(y - mean), axis=0, keepdims=True)
        x = (y - mean) / jnp.sqrt(var + BN_EPS) * g + be
    wh, bh = params["head"]
    logits = x @ wh.T + bh
    return jax.nn.softmax(logits, axis=-1)


# ----------------------------- main ------------------------------------------

if __name__ == "__main__":
    B = 8                    # small test batch (use the gridded TODO path at scale)
    EMBED_DIM = 128
    NUM_HIDDEN_LAYERS = 3
    INPUT_DIM = 324          # 54 facelets x 6 colors
    OUTPUT_DIM = 18

    key = jax.random.PRNGKey(0)
    key, k_in, k_p = jax.random.split(key, 3)

    inputs = jax.random.randint(k_in, (B, 54), 0, 6, dtype=jnp.int32)
    params_f32 = init_params(k_p, EMBED_DIM, NUM_HIDDEN_LAYERS, INPUT_DIM, OUTPUT_DIM)
    kparams = pack_kernel_params(params_f32)

    fwd = jax.jit(functools.partial(fused_forward, output_dim=OUTPUT_DIM))
    out = jax.block_until_ready(fwd(inputs, kparams))

    assert out.shape == (B, OUTPUT_DIM)
    out_f32 = out.astype(jnp.float32)
    assert bool(jnp.all(jnp.isfinite(out_f32)))
    assert bool(jnp.all(out_f32 >= 0.0))
    # bf16 output quantization + approx (EUP) reciprocal -> relaxed sum-to-1 tol
    assert bool(jnp.allclose(jnp.sum(out_f32, axis=-1), 1.0, atol=2e-2))

    # Check against the pure-JAX f32 reference (bf16 matmul operands, bf16
    # output, approx reciprocal keep probabilities within a few e-2 absolute).
    ref = reference_forward(inputs, params_f32)
    assert bool(jnp.allclose(out_f32, ref, atol=3e-2)), float(
        jnp.max(jnp.abs(out_f32 - ref)))

    print("KERNEL_OK")
</pallas_src>

<mosaic_0001>
module attributes {stable_mosaic.version = 11 : i64} {
  func.func @kernel(%arg0: memref<8x384xi8, #tpu.memory_space<vmem>>, %arg1: memref<384x128xbf16, #tpu.memory_space<vmem>>, %arg2: memref<3x128x128xbf16, #tpu.memory_space<vmem>>, %arg3: memref<4x8x128xf32, #tpu.memory_space<vmem>>, %arg4: memref<8x128xbf16, #tpu.memory_space<vmem>>) attributes {dimension_semantics = [], scalar_prefetch = 0 : i64, scratch_operands = 0 : i64, tpu.core_type = #tpu.core_type<tc>} {
    %c0 = arith.constant 0 : index
    %c0_0 = arith.constant 0 : index
    %0 = vector.load %arg0[%c0, %c0_0] : memref<8x384xi8, #tpu.memory_space<vmem>>, vector<8x384xi8>
    %1 = arith.sitofp %0 : vector<8x384xi8> to vector<8x384xf32>
    %2 = arith.truncf %1 : vector<8x384xf32> to vector<8x384xbf16>
    %c0_1 = arith.constant 0 : index
    %c0_2 = arith.constant 0 : index
    %3 = vector.load %arg1[%c0_1, %c0_2] : memref<384x128xbf16, #tpu.memory_space<vmem>>, vector<384x128xbf16>
    %c0_3 = arith.constant 0 : index
    %c0_4 = arith.constant 0 : index
    %c0_5 = arith.constant 0 : index
    %4 = vector.load %arg3[%c0_3, %c0_4, %c0_5] : memref<4x8x128xf32, #tpu.memory_space<vmem>>, vector<1x8x128xf32>
    %5 = vector.shape_cast %4 : vector<1x8x128xf32> to vector<8x128xf32>
    %cst = arith.constant dense<0.000000e+00> : vector<8x128xf32>
    %6 = tpu.matmul %2, %3, %cst {dimension_numbers = #tpu.dot_dimension_numbers<[1], [0], [0], [1], [0, 0, 1, 1], [], []>} : vector<8x384xbf16>, vector<384x128xbf16>, vector<8x128xf32> -> vector<8x128xf32>
    %7 = vector.extract_strided_slice %5 {offsets = [0, 0], sizes = [1, 128], strides = [1, 1]} : vector<8x128xf32> to vector<1x128xf32>
    %8 = vector.broadcast %7 : vector<1x128xf32> to vector<8x128xf32>
    %9 = arith.addf %6, %8 : vector<8x128xf32>
    %cst_6 = arith.constant 0.000000e+00 : f32
    %10 = vector.broadcast %cst_6 : f32 to vector<8x128xf32>
    %11 = arith.maximumf %9, %10 : vector<8x128xf32>
    %cst_7 = arith.constant dense<0.000000e+00> : vector<128xf32>
    %12 = vector.multi_reduction <add>, %11, %cst_7 [0] : vector<8x128xf32> to vector<128xf32>
    %13 = vector.shape_cast %12 : vector<128xf32> to vector<1x128xf32>
    %cst_8 = arith.constant 8.000000e+00 : f32
    %14 = vector.broadcast %cst_8 : f32 to vector<1x128xf32>
    %15 = arith.divf %13, %14 : vector<1x128xf32>
    %16 = vector.broadcast %15 : vector<1x128xf32> to vector<8x128xf32>
    %17 = arith.subf %11, %16 : vector<8x128xf32>
    %18 = arith.mulf %17, %17 : vector<8x128xf32>
    %cst_9 = arith.constant dense<0.000000e+00> : vector<128xf32>
    %19 = vector.multi_reduction <add>, %18, %cst_9 [0] : vector<8x128xf32> to vector<128xf32>
    %20 = vector.shape_cast %19 : vector<128xf32> to vector<1x128xf32>
    %cst_10 = arith.constant 8.000000e+00 : f32
    %21 = vector.broadcast %cst_10 : f32 to vector<1x128xf32>
    %22 = arith.divf %20, %21 : vector<1x128xf32>
    %23 = vector.extract_strided_slice %5 {offsets = [1, 0], sizes = [1, 128], strides = [1, 1]} : vector<8x128xf32> to vector<1x128xf32>
    %cst_11 = arith.constant 9.99999974E-6 : f32
    %24 = vector.broadcast %cst_11 : f32 to vector<1x128xf32>
    %25 = arith.addf %22, %24 : vector<1x128xf32>
    %26 = math.rsqrt %25 : vector<1x128xf32>
    %27 = arith.mulf %23, %26 : vector<1x128xf32>
    %28 = vector.extract_strided_slice %5 {offsets = [2, 0], sizes = [1, 128], strides = [1, 1]} : vector<8x128xf32> to vector<1x128xf32>
    %29 = arith.mulf %15, %27 : vector<1x128xf32>
    %30 = arith.subf %28, %29 : vector<1x128xf32>
    %31 = vector.broadcast %27 : vector<1x128xf32> to vector<8x128xf32>
    %32 = arith.mulf %11, %31 : vector<8x128xf32>
    %33 = vector.broadcast %30 : vector<1x128xf32> to vector<8x128xf32>
    %34 = arith.addf %32, %33 : vector<8x128xf32>
    %35 = arith.truncf %34 : vector<8x128xf32> to vector<8x128xbf16>
    %c0_12 = arith.constant 0 : index
    %c0_13 = arith.constant 0 : index
    %c0_14 = arith.constant 0 : index
    %36 = vector.load %arg2[%c0_12, %c0_13, %c0_14] : memref<3x128x128xbf16, #tpu.memory_space<vmem>>, vector<1x128x128xbf16>
    %37 = vector.shape_cast %36 : vector<1x128x128xbf16> to vector<128x128xbf16>
    %c1 = arith.constant 1 : index
    %c0_15 = arith.constant 0 : index
    %c0_16 = arith.constant 0 : index
    %38 = vector.load %arg3[%c1, %c0_15, %c0_16] : memref<4x8x128xf32, #tpu.memory_space<vmem>>, vector<1x8x128xf32>
    %39 = vector.shape_cast %38 : vector<1x8x128xf32> to vector<8x128xf32>
    %cst_17 = arith.constant dense<0.000000e+00> : vector<8x128xf32>
    %40 = tpu.matmul %35, %37, %cst_17 {dimension_numbers = #tpu.dot_dimension_numbers<[1], [0], [0], [1], [0, 0, 1, 1], [], []>} : vector<8x128xbf16>, vector<128x128xbf16>, vector<8x128xf32> -> vector<8x128xf32>
    %41 = vector.extract_strided_slice %39 {offsets = [0, 0], sizes = [1, 128], strides = [1, 1]} : vector<8x128xf32> to vector<1x128xf32>
    %42 = vector.broadcast %41 : vector<1x128xf32> to vector<8x128xf32>
    %43 = arith.addf %40, %42 : vector<8x128xf32>
    %cst_18 = arith.constant 0.000000e+00 : f32
    %44 = vector.broadcast %cst_18 : f32 to vector<8x128xf32>
    %45 = arith.maximumf %43, %44 : vector<8x128xf32>
    %cst_19 = arith.constant dense<0.000000e+00> : vector<128xf32>
    %46 = vector.multi_reduction <add>, %45, %cst_19 [0] : vector<8x128xf32> to vector<128xf32>
    %47 = vector.shape_cast %46 : vector<128xf32> to vector<1x128xf32>
    %cst_20 = arith.constant 8.000000e+00 : f32
    %48 = vector.broadcast %cst_20 : f32 to vector<1x128xf32>
    %49 = arith.divf %47, %48 : vector<1x128xf32>
    %50 = vector.broadcast %49 : vector<1x128xf32> to vector<8x128xf32>
    %51 = arith.subf %45, %50 : vector<8x128xf32>
    %52 = arith.mulf %51, %51 : vector<8x128xf32>
    %cst_21 = arith.constant dense<0.000000e+00> : vector<128xf32>
    %53 = vector.multi_reduction <add>, %52, %cst_21 [0] : vector<8x128xf32> to vector<128xf32>
    %54 = vector.shape_cast %53 : vector<128xf32> to vector<1x128xf32>
    %cst_22 = arith.constant 8.000000e+00 : f32
    %55 = vector.broadcast %cst_22 : f32 to vector<1x128xf32>
    %56 = arith.divf %54, %55 : vector<1x128xf32>
    %57 = vector.extract_strided_slice %39 {offsets = [1, 0], sizes = [1, 128], strides = [1, 1]} : vector<8x128xf32> to vector<1x128xf32>
    %cst_23 = arith.constant 9.99999974E-6 : f32
    %58 = vector.broadcast %cst_23 : f32 to vector<1x128xf32>
    %59 = arith.addf %56, %58 : vector<1x128xf32>
    %60 = math.rsqrt %59 : vector<1x128xf32>
    %61 = arith.mulf %57, %60 : vector<1x128xf32>
    %62 = vector.extract_strided_slice %39 {offsets = [2, 0], sizes = [1, 128], strides = [1, 1]} : vector<8x128xf32> to vector<1x128xf32>
    %63 = arith.mulf %49, %61 : vector<1x128xf32>
    %64 = arith.subf %62, %63 : vector<1x128xf32>
    %65 = vector.broadcast %61 : vector<1x128xf32> to vector<8x128xf32>
    %66 = arith.mulf %45, %65 : vector<8x128xf32>
    %67 = vector.broadcast %64 : vector<1x128xf32> to vector<8x128xf32>
    %68 = arith.addf %66, %67 : vector<8x128xf32>
    %69 = arith.truncf %68 : vector<8x128xf32> to vector<8x128xbf16>
    %c1_24 = arith.constant 1 : index
    %c0_25 = arith.constant 0 : index
    %c0_26 = arith.constant 0 : index
    %70 = vector.load %arg2[%c1_24, %c0_25, %c0_26] : memref<3x128x128xbf16, #tpu.memory_space<vmem>>, vector<1x128x128xbf16>
    %71 = vector.shape_cast %70 : vector<1x128x128xbf16> to vector<128x128xbf16>
    %c2 = arith.constant 2 : index
    %c0_27 = arith.constant 0 : index
    %c0_28 = arith.constant 0 : index
    %72 = vector.load %arg3[%c2, %c0_27, %c0_28] : memref<4x8x128xf32, #tpu.memory_space<vmem>>, vector<1x8x128xf32>
    %73 = vector.shape_cast %72 : vector<1x8x128xf32> to vector<8x128xf32>
    %cst_29 = arith.constant dense<0.000000e+00> : vector<8x128xf32>
    %74 = tpu.matmul %69, %71, %cst_29 {dimension_numbers = #tpu.dot_dimension_numbers<[1], [0], [0], [1], [0, 0, 1, 1], [], []>} : vector<8x128xbf16>, vector<128x128xbf16>, vector<8x128xf32> -> vector<8x128xf32>
    %75 = vector.extract_strided_slice %73 {offsets = [0, 0], sizes = [1, 128], strides = [1, 1]} : vector<8x128xf32> to vector<1x128xf32>
    %76 = vector.broadcast %75 : vector<1x128xf32> to vector<8x128xf32>
    %77 = arith.addf %74, %76 : vector<8x128xf32>
    %cst_30 = arith.constant 0.000000e+00 : f32
    %78 = vector.broadcast %cst_30 : f32 to vector<8x128xf32>
    %79 = arith.maximumf %77, %78 : vector<8x128xf32>
    %cst_31 = arith.constant dense<0.000000e+00> : vector<128xf32>
    %80 = vector.multi_reduction <add>, %79, %cst_31 [0] : vector<8x128xf32> to vector<128xf32>
    %81 = vector.shape_cast %80 : vector<128xf32> to vector<1x128xf32>
    %cst_32 = arith.constant 8.000000e+00 : f32
    %82 = vector.broadcast %cst_32 : f32 to vector<1x128xf32>
    %83 = arith.divf %81, %82 : vector<1x128xf32>
    %84 = vector.broadcast %83 : vector<1x128xf32> to vector<8x128xf32>
    %85 = arith.subf %79, %84 : vector<8x128xf32>
    %86 = arith.mulf %85, %85 : vector<8x128xf32>
    %cst_33 = arith.constant dense<0.000000e+00> : vector<128xf32>
    %87 = vector.multi_reduction <add>, %86, %cst_33 [0] : vector<8x128xf32> to vector<128xf32>
    %88 = vector.shape_cast %87 : vector<128xf32> to vector<1x128xf32>
    %cst_34 = arith.constant 8.000000e+00 : f32
    %89 = vector.broadcast %cst_34 : f32 to vector<1x128xf32>
    %90 = arith.divf %88, %89 : vector<1x128xf32>
    %91 = vector.extract_strided_slice %73 {offsets = [1, 0], sizes = [1, 128], strides = [1, 1]} : vector<8x128xf32> to vector<1x128xf32>
    %cst_35 = arith.constant 9.99999974E-6 : f32
    %92 = vector.broadcast %cst_35 : f32 to vector<1x128xf32>
    %93 = arith.addf %90, %92 : vector<1x128xf32>
    %94 = math.rsqrt %93 : vector<1x128xf32>
    %95 = arith.mulf %91, %94 : vector<1x128xf32>
    %96 = vector.extract_strided_slice %73 {offsets = [2, 0], sizes = [1, 128], strides = [1, 1]} : vector<8x128xf32> to vector<1x128xf32>
    %97 = arith.mulf %83, %95 : vector<1x128xf32>
    %98 = arith.subf %96, %97 : vector<1x128xf32>
    %99 = vector.broadcast %95 : vector<1x128xf32> to vector<8x128xf32>
    %100 = arith.mulf %79, %99 : vector<8x128xf32>
    %101 = vector.broadcast %98 : vector<1x128xf32> to vector<8x128xf32>
    %102 = arith.addf %100, %101 : vector<8x128xf32>
    %103 = arith.truncf %102 : vector<8x128xf32> to vector<8x128xbf16>
    %c2_36 = arith.constant 2 : index
    %c0_37 = arith.constant 0 : index
    %c0_38 = arith.constant 0 : index
    %104 = vector.load %arg2[%c2_36, %c0_37, %c0_38] : memref<3x128x128xbf16, #tpu.memory_space<vmem>>, vector<1x128x128xbf16>
    %105 = vector.shape_cast %104 : vector<1x128x128xbf16> to vector<128x128xbf16>
    %cst_39 = arith.constant dense<0.000000e+00> : vector<8x128xf32>
    %106 = tpu.matmul %103, %105, %cst_39 {dimension_numbers = #tpu.dot_dimension_numbers<[1], [0], [0], [1], [0, 0, 1, 1], [], []>} : vector<8x128xbf16>, vector<128x128xbf16>, vector<8x128xf32> -> vector<8x128xf32>
    %c3 = arith.constant 3 : index
    %c0_40 = arith.constant 0 : index
    %c0_41 = arith.constant 0 : index
    %107 = vector.load %arg3[%c3, %c0_40, %c0_41] : memref<4x8x128xf32, #tpu.memory_space<vmem>>, vector<1x8x128xf32>
    %108 = vector.shape_cast %107 : vector<1x8x128xf32> to vector<8x128xf32>
    %109 = vector.extract_strided_slice %108 {offsets = [0, 0], sizes = [1, 128], strides = [1, 1]} : vector<8x128xf32> to vector<1x128xf32>
    %110 = vector.broadcast %109 : vector<1x128xf32> to vector<8x128xf32>
    %111 = arith.addf %106, %110 : vector<8x128xf32>
    %cst_42 = arith.constant dense<0xFF800000> : vector<8xf32>
    %112 = vector.multi_reduction <maximumf>, %111, %cst_42 [1] : vector<8x128xf32> to vector<8xf32>
    %113 = vector.shape_cast %112 : vector<8xf32> to vector<8x1xf32>
    %114 = vector.broadcast %113 : vector<8x1xf32> to vector<8x128xf32>
    %115 = arith.subf %111, %114 : vector<8x128xf32>
    %116 = math.exp %115 : vector<8x128xf32>
    %cst_43 = arith.constant dense<0.000000e+00> : vector<8xf32>
    %117 = vector.multi_reduction <add>, %116, %cst_43 [1] : vector<8x128xf32> to vector<8xf32>
    %118 = vector.shape_cast %117 : vector<8xf32> to vector<8x1xf32>
    %119 = tpu.reciprocal %118 {approx = true} : vector<8x1xf32> -> vector<8x1xf32>
    %120 = vector.broadcast %119 : vector<8x1xf32> to vector<8x128xf32>
    %121 = arith.mulf %116, %120 : vector<8x128xf32>
    %122 = arith.truncf %121 : vector<8x128xf32> to vector<8x128xbf16>
    %c0_44 = arith.constant 0 : index
    %c0_45 = arith.constant 0 : index
    %123 = vector.load %arg4[%c0_44, %c0_45] : memref<8x128xbf16, #tpu.memory_space<vmem>>, vector<8x128xbf16>
    tpu.vector_store %arg4[%c0_44, %c0_45], %122 {strides = array<i32>} : memref<8x128xbf16, #tpu.memory_space<vmem>>, vector<8x128xbf16>,
    return
  }
}

</mosaic_0001>

<llo_original>
// kernel: fused_forward.1
$region0: #{fused_forward.1}
  #allocation0 [shape = 'u32[]', space=smem, size = 0x4, offset = 0x4, fixed_abs, tag = 'smem constant byte address 0x4 - core index']
  #allocation1 [shape = 'u32[144,128]{1,0:T(1,128)}', space=vmem, size = 0x12000, scoped, tag = 'internal scratch']
  %s0 = inlined_call_operand.vmem [shape: s8[8,384], index: 0, kind: input, shape index: {}]
  %s1 = inlined_call_operand.vmem [shape: bf16[384,128], index: 1, kind: input, shape index: {}]
  %s2 = inlined_call_operand.vmem [shape: bf16[3,128,128], index: 2, kind: input, shape index: {}]
  %s3 = inlined_call_operand.vmem [shape: f32[4,8,128], index: 3, kind: input, shape index: {}]
  %s4 = inlined_call_operand.hbm [shape: bf16[8,128], index: 4, kind: output, shape index: {}]
  %s5 = sld [smem:[#allocation0]]
  $region26: #{fused_forward.1} parent=0
    _
  %s7 = ssub.s32 1, %s5
  %s8 = scalar_select 0, %s7, %s5
  $region1: #{fused_forward.1} parent=0
    #allocation2 [shape = 'u8[2048]{0}', space=vmem, size = 0x800, scoped, tag = 'output window, operand 0, single buffered']
    #allocation3 [shape = 's32[1]{0}', space=sflag, size = 0x4, scoped, tag = 'scoped memory for fused_forward.1']
    %9 = vsyncpa [#allocation3], 0
    // Predicated region
    $region2: #{fused_forward.1} parent=1 // pred_check
      _
    $region3: #{fused_forward.1} parent=1 // pred_check_branch
      %11 = sbr.rel (0) target = $region5
    $region4: #{fused_forward.1} parent=1 // pred_region
      _
    $region5: #{fused_forward.1} parent=1 // pred_fallthru
      _
    // Predicated region
    $region6: #{fused_forward.1} parent=1 // pred_check
      _
    $region7: #{fused_forward.1} parent=1 // pred_check_branch
      %13 = sbr.rel (0) target = $region9
    $region8: #{fused_forward.1} parent=1 // pred_region
      _
    $region9: #{fused_forward.1} parent=1 // pred_fallthru
      _
    // Predicated region
    $region10: #{fused_forward.1} parent=1 // pred_check
      _
    $region11: #{fused_forward.1} parent=1 // pred_check_branch
      %15 = sbr.rel (0) target = $region13
    $region12: #{fused_forward.1} parent=1 // pred_region
      _
    $region13: #{fused_forward.1} parent=1 // pred_fallthru
      _
    // Predicated region
    $region14: #{fused_forward.1} parent=1 // pred_check
      _
    $region15: #{fused_forward.1} parent=1 // pred_check_branch
      %17 = sbr.rel (0) target = $region17
    $region16: #{fused_forward.1} parent=1 // pred_region
      _
    $region17: #{fused_forward.1} parent=1 // pred_fallthru
      _
    %v19 = vld [vmem:[%s0] sm:$0x3f]
    %v20 = vunpack.c.l.s8.bf16 %v19
    %v21 = vunpack.c.h.s8.bf16 %v19
    %v22 = vld [vmem:[%s1] sm:$0xf]
    %v23 = vld [vmem:[%s1 + $0x4] sm:$0xf]
    %v24 = vld [vmem:[%s1 + $0x8] sm:$0xf]
    %v25 = vld [vmem:[%s1 + $0xc] sm:$0xf]
    %v26 = vld [vmem:[%s1 + $0x10] sm:$0xf]
    %v27 = vld [vmem:[%s1 + $0x14] sm:$0xf]
    %v28 = vld [vmem:[%s1 + $0x18] sm:$0xf]
    %v29 = vld [vmem:[%s1 + $0x1c] sm:$0xf]
    %v30 = vld [vmem:[%s1 + $0x20] sm:$0xf]
    %v31 = vld [vmem:[%s1 + $0x24] sm:$0xf]
    %v32 = vld [vmem:[%s1 + $0x28] sm:$0xf]
    %v33 = vld [vmem:[%s1 + $0x2c] sm:$0xf]
    %v34 = vld [vmem:[%s1 + $0x30] sm:$0xf]
    %v35 = vld [vmem:[%s1 + $0x34] sm:$0xf]
    %v36 = vld [vmem:[%s1 + $0x38] sm:$0xf]
    %v37 = vld [vmem:[%s1 + $0x3c] sm:$0xf]
    %v38 = vld [vmem:[%s1 + $0x40] sm:$0xf]
    %v39 = vld [vmem:[%s1 + $0x44] sm:$0xf]
    %v40 = vld [vmem:[%s1 + $0x48] sm:$0xf]
    %v41 = vld [vmem:[%s1 + $0x4c] sm:$0xf]
    %v42 = vld [vmem:[%s1 + $0x50] sm:$0xf]
    %v43 = vld [vmem:[%s1 + $0x54] sm:$0xf]
    %v44 = vld [vmem:[%s1 + $0x58] sm:$0xf]
    %v45 = vld [vmem:[%s1 + $0x5c] sm:$0xf]
    %v46 = vld [vmem:[%s1 + $0x60] sm:$0xf]
    %v47 = vld [vmem:[%s1 + $0x64] sm:$0xf]
    %v48 = vld [vmem:[%s1 + $0x68] sm:$0xf]
    %v49 = vld [vmem:[%s1 + $0x6c] sm:$0xf]
    %v50 = vld [vmem:[%s1 + $0x70] sm:$0xf]
    %v51 = vld [vmem:[%s1 + $0x74] sm:$0xf]
    %v52 = vld [vmem:[%s1 + $0x78] sm:$0xf]
    %v53 = vld [vmem:[%s1 + $0x7c] sm:$0xf]
    %v54 = vld [vmem:[%s1 + $0x80] sm:$0xf]
    %v55 = vld [vmem:[%s1 + $0x84] sm:$0xf]
    %v56 = vld [vmem:[%s1 + $0x88] sm:$0xf]
    %v57 = vld [vmem:[%s1 + $0x8c] sm:$0xf]
    %v58 = vld [vmem:[%s1 + $0x90] sm:$0xf]
    %v59 = vld [vmem:[%s1 + $0x94] sm:$0xf]
    %v60 = vld [vmem:[%s1 + $0x98] sm:$0xf]
    %v61 = vld [vmem:[%s1 + $0x9c] sm:$0xf]
    %v62 = vld [vmem:[%s1 + $0xa0] sm:$0xf]
    %v63 = vld [vmem:[%s1 + $0xa4] sm:$0xf]
    %v64 = vld [vmem:[%s1 + $0xa8] sm:$0xf]
    %v65 = vld [vmem:[%s1 + $0xac] sm:$0xf]
    %v66 = vld [vmem:[%s1 + $0xb0] sm:$0xf]
    %v67 = vld [vmem:[%s1 + $0xb4] sm:$0xf]
    %v68 = vld [vmem:[%s1 + $0xb8] sm:$0xf]
    %v69 = vld [vmem:[%s1 + $0xbc] sm:$0xf]
    %v70 = vld [vmem:[%s3] sm:$0xff]
    %v71 = vlaneseq
    %v72 = vshrl.u32 %v71, 7
    %v73 = vsub.s32 0, %v72
    %v74 = vrot.slane %v70, %v73
    %v77 = vunpack.c.l.b16 %v20
    %v78 = vunpack.c.h.b16 %v20
    %v79 = vunpack.c.l.b16 %v21
    %v80 = vpack.c.b16 %v77, %v77
    %v81 = vpack.c.b16 %v78, %v78
    %v82 = vpack.c.b16 %v79, %v79
    %v134 = vunpack.c.l.b16 %v22
    %v135 = vunpack.c.l.b16 %v23
    %v136 = vunpack.c.l.b16 %v24
    %v137 = vunpack.c.l.b16 %v25
    %v138 = vunpack.c.l.b16 %v26
    %v139 = vunpack.c.l.b16 %v27
    %v140 = vunpack.c.l.b16 %v28
    %v141 = vunpack.c.l.b16 %v29
    %v142 = vunpack.c.l.b16 %v30
    %v143 = vunpack.c.l.b16 %v31
    %v144 = vunpack.c.l.b16 %v32
    %v145 = vunpack.c.l.b16 %v33
    %v146 = vunpack.c.l.b16 %v34
    %v147 = vunpack.c.l.b16 %v35
    %v148 = vunpack.c.l.b16 %v36
    %v149 = vunpack.c.l.b16 %v37
    %v150 = vunpack.c.l.b16 %v38
    %v151 = vunpack.c.l.b16 %v39
    %v152 = vunpack.c.l.b16 %v40
    %v153 = vunpack.c.l.b16 %v41
    %v154 = vunpack.c.l.b16 %v42
    %v155 = vunpack.c.l.b16 %v43
    %v156 = vunpack.c.l.b16 %v44
    %v157 = vunpack.c.l.b16 %v45
    %v158 = vunpack.c.l.b16 %v46
    %v159 = vunpack.c.l.b16 %v47
    %v160 = vunpack.c.l.b16 %v48
    %v161 = vunpack.c.l.b16 %v49
    %v162 = vunpack.c.l.b16 %v50
    %v163 = vunpack.c.l.b16 %v51
    %v164 = vunpack.c.l.b16 %v52
    %v165 = vunpack.c.l.b16 %v53
    %v166 = vunpack.c.l.b16 %v54
    %v167 = vunpack.c.l.b16 %v55
    %v168 = vunpack.c.l.b16 %v56
    %v169 = vunpack.c.l.b16 %v57
    %v170 = vunpack.c.l.b16 %v58
    %v171 = vunpack.c.l.b16 %v59
    %v172 = vunpack.c.l.b16 %v60
    %v173 = vunpack.c.l.b16 %v61
    %v174 = vunpack.c.l.b16 %v62
    %v175 = vunpack.c.l.b16 %v63
    %v176 = vunpack.c.l.b16 %v64
    %v177 = vunpack.c.l.b16 %v65
    %v178 = vunpack.c.l.b16 %v66
    %v179 = vunpack.c.l.b16 %v67
    %v180 = vunpack.c.l.b16 %v68
    %v181 = vunpack.c.l.b16 %v69
    %v182 = vpack.c.b16 %v135, %v134
    %v183 = vpack.c.b16 %v137, %v136
    %v184 = vpack.c.b16 %v139, %v138
    %v185 = vpack.c.b16 %v141, %v140
    %v186 = vpack.c.b16 %v143, %v142
    %v187 = vpack.c.b16 %v145, %v144
    %v188 = vpack.c.b16 %v147, %v146
    %v189 = vpack.c.b16 %v149, %v148
    %v190 = vpack.c.b16 %v151, %v150
    %v191 = vpack.c.b16 %v153, %v152
    %v192 = vpack.c.b16 %v155, %v154
    %v193 = vpack.c.b16 %v157, %v156
    %v194 = vpack.c.b16 %v159, %v158
    %v195 = vpack.c.b16 %v161, %v160
    %v196 = vpack.c.b16 %v163, %v162
    %v197 = vpack.c.b16 %v165, %v164
    %v198 = vpack.c.b16 %v167, %v166
    %v199 = vpack.c.b16 %v169, %v168
    %v200 = vpack.c.b16 %v171, %v170
    %v201 = vpack.c.b16 %v173, %v172
    %v202 = vpack.c.b16 %v175, %v174
    %v203 = vpack.c.b16 %v177, %v176
    %v204 = vpack.c.b16 %v179, %v178
    %v205 = vpack.c.b16 %v181, %v180
    %230 = vmatprep.subr.bf16.mxu0 0
    %231 = vmatpush1.bf16.msra.mxu0 %v182
    %232 = vmatprep.subr.bf16.mxu0 0
    %233 = vmatpush1.bf16.msra.mxu0 %v183
    %234 = vmatprep.subr.bf16.mxu0 0
    %235 = vmatpush1.bf16.msra.mxu0 %v184
    %236 = vmatprep.subr.bf16.mxu0 0
    %237 = vmatpush1.bf16.msra.mxu0 %v185
    %238 = vmatprep.subr.bf16.mxu0 0
    %239 = vmatpush1.bf16.msra.mxu0 %v186
    %240 = vmatprep.subr.bf16.mxu0 0
    %241 = vmatpush1.bf16.msra.mxu0 %v187
    %242 = vmatprep.subr.bf16.mxu0 0
    %243 = vmatpush1.bf16.msra.mxu0 %v188
    %244 = vmatprep.subr.bf16.mxu0 0
    %245 = vmatpush1.bf16.msra.mxu0 %v189
    %246 = vmatprep.subr.bf16.mxu0 0
    %247 = vmatpush1.bf16.msra.mxu0 %v190
    %248 = vmatprep.subr.bf16.mxu0 0
    %249 = vmatpush1.bf16.msra.mxu0 %v191
    %250 = vmatprep.subr.bf16.mxu0 0
    %251 = vmatpush1.bf16.msra.mxu0 %v192
    %252 = vmatprep.subr.bf16.mxu0 0
    %253 = vmatpush1.bf16.msra.mxu0 %v193
    %254 = vmatprep.subr.bf16.mxu0 0
    %255 = vmatpush1.bf16.msra.mxu0 %v194
    %256 = vmatprep.subr.bf16.mxu0 0
    %257 = vmatpush1.bf16.msra.mxu0 %v195
    %258 = vmatprep.subr.bf16.mxu0 0
    %259 = vmatpush1.bf16.msra.mxu0 %v196
    %260 = vmatprep.subr.bf16.mxu0 0
    %261 = vmatpush1.bf16.msra.mxu0 %v197
    %262 = vmatprep.mubr.bf16.mxu0 %v81
    %263 = vmatmul.mubr.bf16.gmra.mrb[0].mxu0 %v80
    %v264 = vpop.f32.mrb[0].mxu0
    %v265 = vadd.f32 %v74, %v264
    %v266 = vpop.f32.mrb[0].mxu0
    %v267 = vpop.f32.mrb[0].mxu0
    %v268 = vpop.f32.mrb[0].mxu0
    %269 = vdwg.mxu0
    %270 = vmatprep.subr.bf16.mxu0 0
    %271 = vmatpush1.bf16.msra.mxu0 %v198
    %272 = vmatprep.subr.bf16.mxu0 0
    %273 = vmatpush1.bf16.msra.mxu0 %v199
    %274 = vmatprep.subr.bf16.mxu0 0
    %275 = vmatpush1.bf16.msra.mxu0 %v200
    %276 = vmatprep.subr.bf16.mxu0 0
    %277 = vmatpush1.bf16.msra.mxu0 %v201
    %278 = vmatprep.subr.bf16.mxu0 0
    %279 = vmatpush1.bf16.msra.mxu0 %v202
    %280 = vmatprep.subr.bf16.mxu0 0
    %281 = vmatpush1.bf16.msra.mxu0 %v203
    %282 = vmatprep.subr.bf16.mxu0 0
    %283 = vmatpush1.bf16.msra.mxu0 %v204
    %284 = vmatprep.subr.bf16.mxu0 0
    %285 = vmatpush1.bf16.msra.mxu0 %v205
    %286 = vmatprep.subr.bf16.mxu0 0
    %287 = vmatpush1.bf16.msra.mxu0 0
    %288 = vmatprep.subr.bf16.mxu0 0
    %289 = vmatpush1.bf16.msra.mxu0 0
    %290 = vmatprep.subr.bf16.mxu0 0
    %291 = vmatpush1.bf16.msra.mxu0 0
    %292 = vmatprep.subr.bf16.mxu0 0
    %293 = vmatpush1.bf16.msra.mxu0 0
    %294 = vmatprep.subr.bf16.mxu0 0
    %295 = vmatpush1.bf16.msra.mxu0 0
    %296 = vmatprep.subr.bf16.mxu0 0
    %297 = vmatpush1.bf16.msra.mxu0 0
    %298 = vmatprep.subr.bf16.mxu0 0
    %299 = vmatpush1.bf16.msra.mxu0 0
    %300 = vmatprep.subr.bf16.mxu0 0
    %301 = vmatpush1.bf16.msra.mxu0 0
    %302 = vmatprep.mubr.bf16.mxu0 0
    %303 = vmatmul.mubr.bf16.gmra.mrb[0].mxu0 %v82
    %v304 = vpop.f32.mrb[0].mxu0
    %v305 = vadd.f32 %v265, %v304
    %v306 = vpop.f32.mrb[0].mxu0
    %v307 = vpop.f32.mrb[0].mxu0
    %v308 = vpop.f32.mrb[0].mxu0
    %309 = vdwg.mxu0
    %v310 = vmax.f32 %v305, 0.0
    %v311 = vrot.slane %v310, 4
    %v312 = vadd.f32 %v310, %v311
    %v313 = vrot.slane %v312, 2
    %v314 = vadd.f32 %v312, %v313
    %v315 = vrot.slane %v314, 1
    %v316 = vadd.f32 %v314, %v315
    %v317 = vrcp.pop 8.0
    %v318 = vmul.f32 %v316, %v317
    %v319 = vsub.f32 %v310, %v318
    %v320 = vmul.f32 %v319, %v319
    %v321 = vrot.slane %v320, 4
    %v322 = vadd.f32 %v320, %v321
    %v323 = vrot.slane %v322, 2
    %v324 = vadd.f32 %v322, %v323
    %v325 = vrot.slane %v324, 1
    %v326 = vadd.f32 %v324, %v325
    %v327 = vmul.f32 %v326, %v317
    %v328 = vadd.f32 %v327, 1e-05
    %v329 = vrsqrt.pop %v328
    %v330 = vmul.f32 %v70, %v329
    %v331 = vmul.f32 %v318, %v330
    %v333 = vrot.slane %v331, 7
    %v335 = vsub.f32 %v70, %v333
    %v336 = vlaneseq
    %v337 = vshrl.u32 %v336, 7
    %v338 = vsub.s32 1, %v337
    %v339 = vrot.slane %v330, %v338
    %v340 = vmul.f32 %v310, %v339
    %v341 = vlaneseq
    %v342 = vshrl.u32 %v341, 7
    %v343 = vsub.s32 2, %v342
    %v344 = vrot.slane %v335, %v343
    %v345 = vadd.f32 %v340, %v344
    %v346 = vpack.c.bf16 %v345, %v345
    %v347 = vld [vmem:[%s2] sm:$0xf]
    %v348 = vld [vmem:[%s2 + $0x4] sm:$0xf]
    %v349 = vld [vmem:[%s2 + $0x8] sm:$0xf]
    %v350 = vld [vmem:[%s2 + $0xc] sm:$0xf]
    %v351 = vld [vmem:[%s2 + $0x10] sm:$0xf]
    %v352 = vld [vmem:[%s2 + $0x14] sm:$0xf]
    %v353 = vld [vmem:[%s2 + $0x18] sm:$0xf]
    %v354 = vld [vmem:[%s2 + $0x1c] sm:$0xf]
    %v355 = vld [vmem:[%s2 + $0x20] sm:$0xf]
    %v356 = vld [vmem:[%s2 + $0x24] sm:$0xf]
    %v357 = vld [vmem:[%s2 + $0x28] sm:$0xf]
    %v358 = vld [vmem:[%s2 + $0x2c] sm:$0xf]
    %v359 = vld [vmem:[%s2 + $0x30] sm:$0xf]
    %v360 = vld [vmem:[%s2 + $0x34] sm:$0xf]
    %v361 = vld [vmem:[%s2 + $0x38] sm:$0xf]
    %v362 = vld [vmem:[%s2 + $0x3c] sm:$0xf]
    %s363 = scalar_lea.vmem %s3, 8
    %v364 = vld [vmem:[%s363] sm:$0xff]
    %v365 = vlaneseq
    %v366 = vshrl.u32 %v365, 7
    %v367 = vsub.s32 0, %v366
    %v368 = vrot.slane %v364, %v367
    %v385 = vunpack.c.l.b16 %v347
    %v386 = vunpack.c.l.b16 %v348
    %v387 = vunpack.c.l.b16 %v349
    %v388 = vunpack.c.l.b16 %v350
    %v389 = vunpack.c.l.b16 %v351
    %v390 = vunpack.c.l.b16 %v352
    %v391 = vunpack.c.l.b16 %v353
    %v392 = vunpack.c.l.b16 %v354
    %v393 = vunpack.c.l.b16 %v355
    %v394 = vunpack.c.l.b16 %v356
    %v395 = vunpack.c.l.b16 %v357
    %v396 = vunpack.c.l.b16 %v358
    %v397 = vunpack.c.l.b16 %v359
    %v398 = vunpack.c.l.b16 %v360
    %v399 = vunpack.c.l.b16 %v361
    %v400 = vunpack.c.l.b16 %v362
    %v401 = vpack.c.b16 %v386, %v385
    %v402 = vpack.c.b16 %v388, %v387
    %v403 = vpack.c.b16 %v390, %v389
    %v404 = vpack.c.b16 %v392, %v391
    %v405 = vpack.c.b16 %v394, %v393
    %v406 = vpack.c.b16 %v396, %v395
    %v407 = vpack.c.b16 %v398, %v397
    %v408 = vpack.c.b16 %v400, %v399
    %417 = vmatprep.subr.bf16.mxu0 0
    %418 = vmatpush1.bf16.msra.mxu0 %v401
    %419 = vmatprep.subr.bf16.mxu0 0
    %420 = vmatpush1.bf16.msra.mxu0 %v402
    %421 = vmatprep.subr.bf16.mxu0 0
    %422 = vmatpush1.bf16.msra.mxu0 %v403
    %423 = vmatprep.subr.bf16.mxu0 0
    %424 = vmatpush1.bf16.msra.mxu0 %v404
    %425 = vmatprep.subr.bf16.mxu0 0
    %426 = vmatpush1.bf16.msra.mxu0 %v405
    %427 = vmatprep.subr.bf16.mxu0 0
    %428 = vmatpush1.bf16.msra.mxu0 %v406
    %429 = vmatprep.subr.bf16.mxu0 0
    %430 = vmatpush1.bf16.msra.mxu0 %v407
    %431 = vmatprep.subr.bf16.mxu0 0
    %432 = vmatpush1.bf16.msra.mxu0 %v408
    %433 = vmatprep.subr.bf16.mxu0 0
    %434 = vmatpush1.bf16.msra.mxu0 0
    %435 = vmatprep.subr.bf16.mxu0 0
    %436 = vmatpush1.bf16.msra.mxu0 0
    %437 = vmatprep.subr.bf16.mxu0 0
    %438 = vmatpush1.bf16.msra.mxu0 0
    %439 = vmatprep.subr.bf16.mxu0 0
    %440 = vmatpush1.bf16.msra.mxu0 0
    %441 = vmatprep.subr.bf16.mxu0 0
    %442 = vmatpush1.bf16.msra.mxu0 0
    %443 = vmatprep.subr.bf16.mxu0 0
    %444 = vmatpush1.bf16.msra.mxu0 0
    %445 = vmatprep.subr.bf16.mxu0 0
    %446 = vmatpush1.bf16.msra.mxu0 0
    %447 = vmatprep.subr.bf16.mxu0 0
    %448 = vmatpush1.bf16.msra.mxu0 0
    %449 = vmatprep.mubr.bf16.mxu0 0
    %450 = vmatmul.mubr.bf16.gmra.mrb[0].mxu0 %v346
    %v451 = vpop.f32.mrb[0].mxu0
    %v452 = vadd.f32 %v368, %v451
    %v453 = vpop.f32.mrb[0].mxu0
    %v454 = vpop.f32.mrb[0].mxu0
    %v455 = vpop.f32.mrb[0].mxu0
    %456 = vdwg.mxu0
    %v457 = vmax.f32 %v452, 0.0
    %v458 = vrot.slane %v457, 4
    %v459 = vadd.f32 %v457, %v458
    %v460 = vrot.slane %v459, 2
    %v461 = vadd.f32 %v459, %v460
    %v462 = vrot.slane %v461, 1
    %v463 = vadd.f32 %v461, %v462
    %v464 = vmul.f32 %v463, %v317
    %v465 = vsub.f32 %v457, %v464
    %v466 = vmul.f32 %v465, %v465
    %v467 = vrot.slane %v466, 4
    %v468 = vadd.f32 %v466, %v467
    %v469 = vrot.slane %v468, 2
    %v470 = vadd.f32 %v468, %v469
    %v471 = vrot.slane %v470, 1
    %v472 = vadd.f32 %v470, %v471
    %v473 = vmul.f32 %v472, %v317
    %v474 = vadd.f32 %v473, 1e-05
    %v475 = vrsqrt.pop %v474
    %v476 = vmul.f32 %v364, %v475
    %v477 = vmul.f32 %v464, %v476
    %v479 = vrot.slane %v477, 7
    %v481 = vsub.f32 %v364, %v479
    %v482 = vlaneseq
    %v483 = vshrl.u32 %v482, 7
    %v484 = vsub.s32 1, %v483
    %v485 = vrot.slane %v476, %v484
    %v486 = vmul.f32 %v457, %v485
    %v487 = vlaneseq
    %v488 = vshrl.u32 %v487, 7
    %v489 = vsub.s32 2, %v488
    %v490 = vrot.slane %v481, %v489
    %v491 = vadd.f32 %v486, %v490
    %v492 = vpack.c.bf16 %v491, %v491
    %s493 = scalar_lea.vmem %s2, 64
    %v494 = vld [vmem:[%s493] sm:$0xf]
    %v495 = vld [vmem:[%s493 + $0x4] sm:$0xf]
    %v496 = vld [vmem:[%s493 + $0x8] sm:$0xf]
    %v497 = vld [vmem:[%s493 + $0xc] sm:$0xf]
    %v498 = vld [vmem:[%s493 + $0x10] sm:$0xf]
    %v499 = vld [vmem:[%s493 + $0x14] sm:$0xf]
    %v500 = vld [vmem:[%s493 + $0x18] sm:$0xf]
    %v501 = vld [vmem:[%s493 + $0x1c] sm:$0xf]
    %v502 = vld [vmem:[%s493 + $0x20] sm:$0xf]
    %v503 = vld [vmem:[%s493 + $0x24] sm:$0xf]
    %v504 = vld [vmem:[%s493 + $0x28] sm:$0xf]
    %v505 = vld [vmem:[%s493 + $0x2c] sm:$0xf]
    %v506 = vld [vmem:[%s493 + $0x30] sm:$0xf]
    %v507 = vld [vmem:[%s493 + $0x34] sm:$0xf]
    %v508 = vld [vmem:[%s493 + $0x38] sm:$0xf]
    %v509 = vld [vmem:[%s493 + $0x3c] sm:$0xf]
    %s510 = scalar_lea.vmem %s3, 16
    %v511 = vld [vmem:[%s510] sm:$0xff]
    %v512 = vlaneseq
    %v513 = vshrl.u32 %v512, 7
    %v514 = vsub.s32 0, %v513
    %v515 = vrot.slane %v511, %v514
    %v532 = vunpack.c.l.b16 %v494
    %v533 = vunpack.c.l.b16 %v495
    %v534 = vunpack.c.l.b16 %v496
    %v535 = vunpack.c.l.b16 %v497
    %v536 = vunpack.c.l.b16 %v498
    %v537 = vunpack.c.l.b16 %v499
    %v538 = vunpack.c.l.b16 %v500
    %v539 = vunpack.c.l.b16 %v501
    %v540 = vunpack.c.l.b16 %v502
    %v541 = vunpack.c.l.b16 %v503
    %v542 = vunpack.c.l.b16 %v504
    %v543 = vunpack.c.l.b16 %v505
    %v544 = vunpack.c.l.b16 %v506
    %v545 = vunpack.c.l.b16 %v507
    %v546 = vunpack.c.l.b16 %v508
    %v547 = vunpack.c.l.b16 %v509
    %v548 = vpack.c.b16 %v533, %v532
    %v549 = vpack.c.b16 %v535, %v534
    %v550 = vpack.c.b16 %v537, %v536
    %v551 = vpack.c.b16 %v539, %v538
    %v552 = vpack.c.b16 %v541, %v540
    %v553 = vpack.c.b16 %v543, %v542
    %v554 = vpack.c.b16 %v545, %v544
    %v555 = vpack.c.b16 %v547, %v546
    %564 = vmatprep.subr.bf16.mxu0 0
    %565 = vmatpush1.bf16.msra.mxu0 %v548
    %566 = vmatprep.subr.bf16.mxu0 0
    %567 = vmatpush1.bf16.msra.mxu0 %v549
    %568 = vmatprep.subr.bf16.mxu0 0
    %569 = vmatpush1.bf16.msra.mxu0 %v550
    %570 = vmatprep.subr.bf16.mxu0 0
    %571 = vmatpush1.bf16.msra.mxu0 %v551
    %572 = vmatprep.subr.bf16.mxu0 0
    %573 = vmatpush1.bf16.msra.mxu0 %v552
    %574 = vmatprep.subr.bf16.mxu0 0
    %575 = vmatpush1.bf16.msra.mxu0 %v553
    %576 = vmatprep.subr.bf16.mxu0 0
    %577 = vmatpush1.bf16.msra.mxu0 %v554
    %578 = vmatprep.subr.bf16.mxu0 0
    %579 = vmatpush1.bf16.msra.mxu0 %v555
    %580 = vmatprep.subr.bf16.mxu0 0
    %581 = vmatpush1.bf16.msra.mxu0 0
    %582 = vmatprep.subr.bf16.mxu0 0
    %583 = vmatpush1.bf16.msra.mxu0 0
    %584 = vmatprep.subr.bf16.mxu0 0
    %585 = vmatpush1.bf16.msra.mxu0 0
    %586 = vmatprep.subr.bf16.mxu0 0
    %587 = vmatpush1.bf16.msra.mxu0 0
    %588 = vmatprep.subr.bf16.mxu0 0
    %589 = vmatpush1.bf16.msra.mxu0 0
    %590 = vmatprep.subr.bf16.mxu0 0
    %591 = vmatpush1.bf16.msra.mxu0 0
    %592 = vmatprep.subr.bf16.mxu0 0
    %593 = vmatpush1.bf16.msra.mxu0 0
    %594 = vmatprep.subr.bf16.mxu0 0
    %595 = vmatpush1.bf16.msra.mxu0 0
    %596 = vmatprep.mubr.bf16.mxu0 0
    %597 = vmatmul.mubr.bf16.gmra.mrb[0].mxu0 %v492
    %v598 = vpop.f32.mrb[0].mxu0
    %v599 = vadd.f32 %v515, %v598
    %v600 = vpop.f32.mrb[0].mxu0
    %v601 = vpop.f32.mrb[0].mxu0
    %v602 = vpop.f32.mrb[0].mxu0
    %603 = vdwg.mxu0
    %v604 = vmax.f32 %v599, 0.0
    %v605 = vrot.slane %v604, 4
    %v606 = vadd.f32 %v604, %v605
    %v607 = vrot.slane %v606, 2
    %v608 = vadd.f32 %v606, %v607
    %v609 = vrot.slane %v608, 1
    %v610 = vadd.f32 %v608, %v609
    %v611 = vmul.f32 %v610, %v317
    %v612 = vsub.f32 %v604, %v611
    %v613 = vmul.f32 %v612, %v612
    %v614 = vrot.slane %v613, 4
    %v615 = vadd.f32 %v613, %v614
    %v616 = vrot.slane %v615, 2
    %v617 = vadd.f32 %v615, %v616
    %v618 = vrot.slane %v617, 1
    %v619 = vadd.f32 %v617, %v618
    %v620 = vmul.f32 %v619, %v317
    %v621 = vadd.f32 %v620, 1e-05
    %v622 = vrsqrt.pop %v621
    %v623 = vmul.f32 %v511, %v622
    %v624 = vmul.f32 %v611, %v623
    %v626 = vrot.slane %v624, 7
    %v628 = vsub.f32 %v511, %v626
    %v629 = vlaneseq
    %v630 = vshrl.u32 %v629, 7
    %v631 = vsub.s32 1, %v630
    %v632 = vrot.slane %v623, %v631
    %v633 = vmul.f32 %v604, %v632
    %v634 = vlaneseq
    %v635 = vshrl.u32 %v634, 7
    %v636 = vsub.s32 2, %v635
    %v637 = vrot.slane %v628, %v636
    %v638 = vadd.f32 %v633, %v637
    %v639 = vpack.c.bf16 %v638, %v638
    %s640 = scalar_lea.vmem %s2, 128
    %v641 = vld [vmem:[%s640] sm:$0xf]
    %v642 = vld [vmem:[%s640 + $0x4] sm:$0xf]
    %v643 = vld [vmem:[%s640 + $0x8] sm:$0xf]
    %v644 = vld [vmem:[%s640 + $0xc] sm:$0xf]
    %v645 = vld [vmem:[%s640 + $0x10] sm:$0xf]
    %v646 = vld [vmem:[%s640 + $0x14] sm:$0xf]
    %v647 = vld [vmem:[%s640 + $0x18] sm:$0xf]
    %v648 = vld [vmem:[%s640 + $0x1c] sm:$0xf]
    %v649 = vld [vmem:[%s640 + $0x20] sm:$0xf]
    %v650 = vld [vmem:[%s640 + $0x24] sm:$0xf]
    %v651 = vld [vmem:[%s640 + $0x28] sm:$0xf]
    %v652 = vld [vmem:[%s640 + $0x2c] sm:$0xf]
    %v653 = vld [vmem:[%s640 + $0x30] sm:$0xf]
    %v654 = vld [vmem:[%s640 + $0x34] sm:$0xf]
    %v655 = vld [vmem:[%s640 + $0x38] sm:$0xf]
    %v656 = vld [vmem:[%s640 + $0x3c] sm:$0xf]
    %s657 = scalar_lea.vmem %s3, 24
    %v658 = vld [vmem:[%s657] sm:$0xff]
    %v659 = vlaneseq
    %v660 = vshrl.u32 %v659, 7
    %v661 = vsub.s32 0, %v660
    %v662 = vrot.slane %v658, %v661
    %v679 = vunpack.c.l.b16 %v641
    %v680 = vunpack.c.l.b16 %v642
    %v681 = vunpack.c.l.b16 %v643
    %v682 = vunpack.c.l.b16 %v644
    %v683 = vunpack.c.l.b16 %v645
    %v684 = vunpack.c.l.b16 %v646
    %v685 = vunpack.c.l.b16 %v647
    %v686 = vunpack.c.l.b16 %v648
    %v687 = vunpack.c.l.b16 %v649
    %v688 = vunpack.c.l.b16 %v650
    %v689 = vunpack.c.l.b16 %v651
    %v690 = vunpack.c.l.b16 %v652
    %v691 = vunpack.c.l.b16 %v653
    %v692 = vunpack.c.l.b16 %v654
    %v693 = vunpack.c.l.b16 %v655
    %v694 = vunpack.c.l.b16 %v656
    %v695 = vpack.c.b16 %v680, %v679
    %v696 = vpack.c.b16 %v682, %v681
    %v697 = vpack.c.b16 %v684, %v683
    %v698 = vpack.c.b16 %v686, %v685
    %v699 = vpack.c.b16 %v688, %v687
    %v700 = vpack.c.b16 %v690, %v689
    %v701 = vpack.c.b16 %v692, %v691
    %v702 = vpack.c.b16 %v694, %v693
    %711 = vmatprep.subr.bf16.mxu0 0
    %712 = vmatpush1.bf16.msra.mxu0 %v695
    %713 = vmatprep.subr.bf16.mxu0 0
    %714 = vmatpush1.bf16.msra.mxu0 %v696
    %715 = vmatprep.subr.bf16.mxu0 0
    %716 = vmatpush1.bf16.msra.mxu0 %v697
    %717 = vmatprep.subr.bf16.mxu0 0
    %718 = vmatpush1.bf16.msra.mxu0 %v698
    %719 = vmatprep.subr.bf16.mxu0 0
    %720 = vmatpush1.bf16.msra.mxu0 %v699
    %721 = vmatprep.subr.bf16.mxu0 0
    %722 = vmatpush1.bf16.msra.mxu0 %v700
    %723 = vmatprep.subr.bf16.mxu0 0
    %724 = vmatpush1.bf16.msra.mxu0 %v701
    %725 = vmatprep.subr.bf16.mxu0 0
    %726 = vmatpush1.bf16.msra.mxu0 %v702
    %727 = vmatprep.subr.bf16.mxu0 0
    %728 = vmatpush1.bf16.msra.mxu0 0
    %729 = vmatprep.subr.bf16.mxu0 0
    %730 = vmatpush1.bf16.msra.mxu0 0
    %731 = vmatprep.subr.bf16.mxu0 0
    %732 = vmatpush1.bf16.msra.mxu0 0
    %733 = vmatprep.subr.bf16.mxu0 0
    %734 = vmatpush1.bf16.msra.mxu0 0
    %735 = vmatprep.subr.bf16.mxu0 0
    %736 = vmatpush1.bf16.msra.mxu0 0
    %737 = vmatprep.subr.bf16.mxu0 0
    %738 = vmatpush1.bf16.msra.mxu0 0
    %739 = vmatprep.subr.bf16.mxu0 0
    %740 = vmatpush1.bf16.msra.mxu0 0
    %741 = vmatprep.subr.bf16.mxu0 0
    %742 = vmatpush1.bf16.msra.mxu0 0
    %743 = vmatprep.mubr.bf16.mxu0 0
    %744 = vmatmul.mubr.bf16.gmra.mrb[0].mxu0 %v639
    %v745 = vpop.f32.mrb[0].mxu0
    %v746 = vadd.f32 %v662, %v745
    %v747 = vpop.f32.mrb[0].mxu0
    %v748 = vpop.f32.mrb[0].mxu0
    %v749 = vpop.f32.mrb[0].mxu0
    %750 = vdwg.mxu0
    %751 = vmax.xlane.f32.xlu0 %v746
    %v752 = vpop.xlane.xlu0 %751
    %v753 = vsub.f32 %v746, %v752
    %v754 = vmul.f32 %v753, 1.442695
    %v755 = vpow.pop %v754
    %756 = vadd.xlane.f32.xlu0 %v755
    %v757 = vpop.xlane.xlu0 %756
    %v758 = vrcp.pop %v757
    %v759 = vmul.f32 %v755, %v758
    %v760 = vpack.c.bf16 %v759, %v759
    %761 = vst [vmem:[#allocation2] sm:$0xf] %v760
    // Predicated region
    $region18: #{fused_forward.1} parent=1 // pred_check
      _
    $region19: #{fused_forward.1} parent=1 // pred_check_branch
      %763 = sbr.rel (0) target = $region21
    $region20: #{fused_forward.1} parent=1 // pred_region
      %s765 = ssub.s32 64, 64
      %766 = vsyncadd [#allocation3], %s765
      %s768 = sshll.u32 [#allocation2], 4
      %s769 = int_to_ptr.vmem [resolvable:$true] %s768
      %771 = dma.vmem_to_hbm [thread:$0]  %s769, 64, %s4, [#allocation3]
    $region21: #{fused_forward.1} parent=1 // pred_fallthru
      _
    // Predicated region
    $region22: #{fused_forward.1} parent=1 // pred_check
      _
    $region23: #{fused_forward.1} parent=1 // pred_check_branch
      %773 = sbr.rel (0) target = $region25
    $region24: #{fused_forward.1} parent=1 // pred_region
      %774 = dma.done [#allocation3], 64
    $region25: #{fused_forward.1} parent=1 // pred_fallthru
      _
    %775 = vsyncpa [#allocation3], 1

</llo_original>
